<compile_context>
chip_gen: v6e
topology: v6e:2x2x1
jax: 0.10.0
libtpu: 0.0.40
codegen_flags: <defaults>
</compile_context>

<pallas_src>
import functools

import jax
import jax.numpy as jnp
import numpy as np
from jax import lax
from jax.experimental import pallas as pl
from jax.experimental.pallas import tpu as pltpu

_LANES = 128


def _bce_dice_kernel(x_ref, y_ref, out_ref,
                     bce_acc, inter_acc, psum_acc, msum_acc,
                     *, smooth: float, dice_weight: float,
                     d_total: int, d_tile: int, needs_mask: bool):
    k = pl.program_id(0)
    n = x_ref.shape[0]
    sub = d_tile // _LANES

    @pl.when(k == 0)
    def _init():
        bce_acc[...] = jnp.zeros_like(bce_acc)
        inter_acc[...] = jnp.zeros_like(inter_acc)
        psum_acc[...] = jnp.zeros_like(psum_acc)
        msum_acc[...] = jnp.zeros_like(msum_acc)

    # Native-dtype DMA, f32 math/accumulation in-kernel.
    x = x_ref[...].astype(jnp.float32)
    y = y_ref[...].astype(jnp.float32)

    if needs_mask:
        col = k * d_tile + lax.broadcasted_iota(jnp.int32, (n, d_tile), 1)
        valid_b = col < d_total
        valid = valid_b.astype(jnp.float32)
        x = jnp.where(valid_b, x, 0.0)
        y = jnp.where(valid_b, y, 0.0)
    else:
        valid = None

    # ---- shared transcendental: e = exp(-|x|) ----
    e = jnp.exp(-jnp.abs(x))

    # Numerically stable BCE-with-logits elementwise term.
    bce_elem = jnp.maximum(x, 0.0) - x * y + jnp.log1p(e)

    # sigmoid(x) reusing e; then the Dice module's second sigmoid.
    inv1pe = 1.0 / (1.0 + e)
    t = jnp.where(x >= 0.0, inv1pe, e * inv1pe)        # sigmoid(x)
    prob = 1.0 / (1.0 + jnp.exp(-t))                   # sigmoid(sigmoid(x))

    if needs_mask:
        bce_elem = bce_elem * valid
        prob = prob * valid
        # y is already zeroed on masked lanes.

    # Lane-width partial sums: (N, d_tile) -> (N, 128); full lane reduction is
    # deferred to the finalize block.
    def lane_partial(v):
        return jnp.sum(v.reshape(n, sub, _LANES), axis=1)

    bce_acc[...] += lane_partial(bce_elem)
    inter_acc[...] += lane_partial(prob * y)
    psum_acc[...] += lane_partial(prob)
    msum_acc[...] += lane_partial(y)

    @pl.when(k == pl.num_programs(0) - 1)
    def _finalize():
        bce_row = jnp.sum(bce_acc[...], axis=1, keepdims=True)    # (N, 1)
        inter = jnp.sum(inter_acc[...], axis=1, keepdims=True)    # (N, 1)
        psum = jnp.sum(psum_acc[...], axis=1, keepdims=True)      # (N, 1)
        msum = jnp.sum(msum_acc[...], axis=1, keepdims=True)      # (N, 1)

        dice = 1.0 - (2.0 * inter + smooth) / (psum + msum + smooth)         # (N, 1)
        bce_mean = jnp.sum(bce_row, axis=0, keepdims=True) / float(n * d_total)  # (1, 1)
        dice_mean = jnp.sum(dice, axis=0, keepdims=True) / float(n)              # (1, 1)
        out_ref[...] = (bce_mean + dice_weight * dice_mean).astype(out_ref.dtype)


def bce_dice_loss(x: jax.Array, y: jax.Array, *, dice_weight: float = 1.0,
                  smooth: float = 1.0, d_tile: int | None = None) -> jax.Array:
    """x, y: NCHW tensors of identical shape (logits, binary targets)."""
    assert x.shape == y.shape, "predict & target shapes don't match"
    n = x.shape[0]
    d = int(np.prod(x.shape[1:]))

    # Free views; keep native dtype (no HBM-doubling upcast in the wrapper).
    x2 = x.reshape(n, d)
    y2 = y.reshape(n, d)

    x_bytes = np.dtype(x2.dtype).itemsize
    y_bytes = np.dtype(y2.dtype).itemsize
    itemsize = max(x_bytes, y_bytes)

    d_pad = _LANES * pl.cdiv(d, _LANES)
    if d_tile is None:
        # 2 inputs x 2 pipeline buffers x N x d_tile x itemsize <= ~16 MiB
        # -> safe on v5e/v6e (128 MiB VMEM) and v7x (64 MiB VMEM), still large
        # enough to sit at the HBM roofline for this mem-bound kernel.
        input_budget = 16 << 20
        max_tile = max(_LANES,
                       (input_budget // (4 * n * itemsize)) // _LANES * _LANES)
        d_tile = int(min(d_pad, max_tile))
    else:
        assert d_tile % _LANES == 0, "d_tile must be a multiple of 128"
        d_tile = int(min(d_tile, d_pad))

    grid = (pl.cdiv(d, d_tile),)
    needs_mask = (grid[0] * d_tile) != d

    # Advisory cost estimate so XLA can overlap surrounding work.
    cost = pl.CostEstimate(
        flops=12 * n * d,
        transcendentals=3 * n * d,
        bytes_accessed=n * d * (x_bytes + y_bytes) + 4,
    )

    needed_vmem = 2 * 2 * n * d_tile * itemsize + 4 * n * _LANES * 4 + (1 << 20)
    vmem_limit = int(min(48 << 20, max(32 << 20, needed_vmem)))

    kernel = functools.partial(
        _bce_dice_kernel, smooth=float(smooth), dice_weight=float(dice_weight),
        d_total=d, d_tile=d_tile, needs_mask=needs_mask)

    # TODO(synk): on v7x add a leading "parallel" grid axis splitting the D range
    # across the 2 TensorCores (per-core accumulators + a tiny combine pass).
    out = pl.pallas_call(
        kernel,
        out_shape=jax.ShapeDtypeStruct((1, 1), jnp.float32),
        grid_spec=pltpu.PrefetchScalarGridSpec(
            num_scalar_prefetch=0,
            grid=grid,
            in_specs=[pl.BlockSpec((n, d_tile), lambda k: (0, k)),
                      pl.BlockSpec((n, d_tile), lambda k: (0, k))],
            out_specs=pl.BlockSpec((1, 1), lambda k: (0, 0)),
            scratch_shapes=[pltpu.VMEM((n, _LANES), jnp.float32)] * 4,
        ),
        compiler_params=pltpu.CompilerParams(
            dimension_semantics=("arbitrary",),
            vmem_limit_bytes=vmem_limit),
        cost_estimate=cost,
    )(x2, y2)
    return out[0, 0]


def _reference(x, y, dice_weight=1.0, smooth=1.0):
    x = x.astype(jnp.float32)
    y = y.astype(jnp.float32)
    bce = jnp.mean(jnp.maximum(x, 0.0) - x * y + jnp.log1p(jnp.exp(-jnp.abs(x))))
    prob = jax.nn.sigmoid(jax.nn.sigmoid(x)).reshape(x.shape[0], -1)
    mask = y.reshape(y.shape[0], -1)
    inter = jnp.sum(prob * mask, axis=1)
    dice = 1.0 - (2.0 * inter + smooth) / (jnp.sum(prob, axis=1) + jnp.sum(mask, axis=1) + smooth)
    return bce + dice_weight * jnp.mean(dice)


if __name__ == "__main__":
    key = jax.random.PRNGKey(0)
    kx, ky = jax.random.split(key)

    # Main test: NCHW = (2, 4, 16, 16) -> D = 1024.
    N, C, H, W = 2, 4, 16, 16
    x = jax.random.normal(kx, (N, C, H, W), dtype=jnp.float32)            # logits
    y = jax.random.bernoulli(ky, 0.5, (N, C, H, W)).astype(jnp.float32)   # binary labels
    ref = jax.block_until_ready(_reference(x, y, 1.0, 1.0))

    # Default (auto) tile size.
    loss = jax.block_until_ready(bce_dice_loss(x, y, dice_weight=1.0, smooth=1.0))
    assert np.isfinite(float(loss)), "kernel produced non-finite loss"
    assert abs(float(loss) - float(ref)) < 1e-4, f"mismatch: {loss} vs {ref}"

    # Forced multi-tile grid to exercise the accumulator / pipelining path.
    loss_t = jax.block_until_ready(
        bce_dice_loss(x, y, dice_weight=1.0, smooth=1.0, d_tile=256))
    assert abs(float(loss_t) - float(ref)) < 1e-4, f"tiled mismatch: {loss_t} vs {ref}"

    # Remainder-masking path: D = 3*10*10 = 300 (not a multiple of 128).
    x3 = jax.random.normal(kx, (2, 3, 10, 10), dtype=jnp.float32)
    y3 = jax.random.bernoulli(ky, 0.5, (2, 3, 10, 10)).astype(jnp.float32)
    ref3 = jax.block_until_ready(_reference(x3, y3, 1.0, 1.0))
    loss3 = jax.block_until_ready(
        bce_dice_loss(x3, y3, dice_weight=1.0, smooth=1.0, d_tile=128))
    assert abs(float(loss3) - float(ref3)) < 1e-4, f"masked mismatch: {loss3} vs {ref3}"

    print("KERNEL_OK")
</pallas_src>

<mosaic_0001>
module attributes {stable_mosaic.version = 11 : i64} {
  func.func @_bce_dice_kernel(%arg0: i32, %arg1: memref<2x1024xf32, #tpu.memory_space<vmem>>, %arg2: memref<2x1024xf32, #tpu.memory_space<vmem>>, %arg3: memref<1x1xf32, #tpu.memory_space<vmem>>, %arg4: memref<2x128xf32, #tpu.memory_space<vmem>>, %arg5: memref<2x128xf32, #tpu.memory_space<vmem>>, %arg6: memref<2x128xf32, #tpu.memory_space<vmem>>, %arg7: memref<2x128xf32, #tpu.memory_space<vmem>>) attributes {dimension_semantics = [#tpu.dimension_semantics<arbitrary>], iteration_bounds = array<i64: 1>, scalar_prefetch = 0 : i64, scratch_operands = 4 : i64, tpu.core_type = #tpu.core_type<tc>, window_params = [{transform_indices = @transform_0, window_bounds = array<i64: 2, 1024>}, {transform_indices = @transform_1, window_bounds = array<i64: 2, 1024>}, {pipeline_mode = #tpu.pipeline_mode<synchronous>, transform_indices = @transform_2, window_bounds = array<i64: 1, 1>}]} {
    %c0_i32 = arith.constant 0 : i32
    %0 = arith.cmpi eq, %arg0, %c0_i32 : i32
    %1 = arith.extui %0 : i1 to i32
    %c0_i32_0 = arith.constant 0 : i32
    %2 = arith.cmpi ne, %1, %c0_i32_0 : i32
    scf.if %2 {
      %cst_33 = arith.constant 0.000000e+00 : f32
      %54 = vector.broadcast %cst_33 : f32 to vector<2x128xf32>
      %c0_34 = arith.constant 0 : index
      %c0_35 = arith.constant 0 : index
      %55 = vector.load %arg4[%c0_34, %c0_35] : memref<2x128xf32, #tpu.memory_space<vmem>>, vector<2x128xf32>
      tpu.vector_store %arg4[%c0_34, %c0_35], %54 {strides = array<i32>} : memref<2x128xf32, #tpu.memory_space<vmem>>, vector<2x128xf32>,
      %cst_36 = arith.constant 0.000000e+00 : f32
      %56 = vector.broadcast %cst_36 : f32 to vector<2x128xf32>
      %c0_37 = arith.constant 0 : index
      %c0_38 = arith.constant 0 : index
      %57 = vector.load %arg5[%c0_37, %c0_38] : memref<2x128xf32, #tpu.memory_space<vmem>>, vector<2x128xf32>
      tpu.vector_store %arg5[%c0_37, %c0_38], %56 {strides = array<i32>} : memref<2x128xf32, #tpu.memory_space<vmem>>, vector<2x128xf32>,
      %cst_39 = arith.constant 0.000000e+00 : f32
      %58 = vector.broadcast %cst_39 : f32 to vector<2x128xf32>
      %c0_40 = arith.constant 0 : index
      %c0_41 = arith.constant 0 : index
      %59 = vector.load %arg6[%c0_40, %c0_41] : memref<2x128xf32, #tpu.memory_space<vmem>>, vector<2x128xf32>
      tpu.vector_store %arg6[%c0_40, %c0_41], %58 {strides = array<i32>} : memref<2x128xf32, #tpu.memory_space<vmem>>, vector<2x128xf32>,
      %cst_42 = arith.constant 0.000000e+00 : f32
      %60 = vector.broadcast %cst_42 : f32 to vector<2x128xf32>
      %c0_43 = arith.constant 0 : index
      %c0_44 = arith.constant 0 : index
      %61 = vector.load %arg7[%c0_43, %c0_44] : memref<2x128xf32, #tpu.memory_space<vmem>>, vector<2x128xf32>
      tpu.vector_store %arg7[%c0_43, %c0_44], %60 {strides = array<i32>} : memref<2x128xf32, #tpu.memory_space<vmem>>, vector<2x128xf32>,
    } else {
    }
    %c0 = arith.constant 0 : index
    %c0_1 = arith.constant 0 : index
    %3 = vector.load %arg1[%c0, %c0_1] : memref<2x1024xf32, #tpu.memory_space<vmem>>, vector<2x1024xf32>
    %c0_2 = arith.constant 0 : index
    %c0_3 = arith.constant 0 : index
    %4 = vector.load %arg2[%c0_2, %c0_3] : memref<2x1024xf32, #tpu.memory_space<vmem>>, vector<2x1024xf32>
    %5 = math.absf %3 : vector<2x1024xf32>
    %cst = arith.constant 0.000000e+00 : f32
    %6 = vector.broadcast %cst : f32 to vector<2x1024xf32>
    %7 = arith.subf %6, %5 : vector<2x1024xf32>
    %8 = math.exp %7 : vector<2x1024xf32>
    %cst_4 = arith.constant 0.000000e+00 : f32
    %9 = vector.broadcast %cst_4 : f32 to vector<2x1024xf32>
    %10 = arith.maximumf %3, %9 : vector<2x1024xf32>
    %11 = arith.mulf %3, %4 : vector<2x1024xf32>
    %12 = arith.subf %10, %11 : vector<2x1024xf32>
    %13 = math.log1p %8 : vector<2x1024xf32>
    %14 = arith.addf %12, %13 : vector<2x1024xf32>
    %cst_5 = arith.constant 1.000000e+00 : f32
    %15 = vector.broadcast %cst_5 : f32 to vector<2x1024xf32>
    %16 = arith.addf %15, %8 : vector<2x1024xf32>
    %cst_6 = arith.constant 1.000000e+00 : f32
    %17 = vector.broadcast %cst_6 : f32 to vector<2x1024xf32>
    %18 = arith.divf %17, %16 : vector<2x1024xf32>
    %cst_7 = arith.constant 0.000000e+00 : f32
    %19 = vector.broadcast %cst_7 : f32 to vector<2x1024xf32>
    %20 = arith.cmpf oge, %3, %19 : vector<2x1024xf32>
    %21 = arith.mulf %8, %18 : vector<2x1024xf32>
    %22 = arith.select %20, %18, %21 : vector<2x1024xi1>, vector<2x1024xf32>
    %cst_8 = arith.constant 0.000000e+00 : f32
    %23 = vector.broadcast %cst_8 : f32 to vector<2x1024xf32>
    %24 = arith.subf %23, %22 : vector<2x1024xf32>
    %25 = math.exp %24 : vector<2x1024xf32>
    %cst_9 = arith.constant 1.000000e+00 : f32
    %26 = vector.broadcast %cst_9 : f32 to vector<2x1024xf32>
    %27 = arith.addf %26, %25 : vector<2x1024xf32>
    %cst_10 = arith.constant 1.000000e+00 : f32
    %28 = vector.broadcast %cst_10 : f32 to vector<2x1024xf32>
    %29 = arith.divf %28, %27 : vector<2x1024xf32>
    %c0_11 = arith.constant 0 : index
    %c0_12 = arith.constant 0 : index
    %30 = vector.load %arg4[%c0_11, %c0_12] : memref<2x128xf32, #tpu.memory_space<vmem>>, vector<2x128xf32>
    %31 = vector.shape_cast %14 : vector<2x1024xf32> to vector<2x8x128xf32>
    %cst_13 = arith.constant dense<0.000000e+00> : vector<2x128xf32>
    %32 = vector.multi_reduction <add>, %31, %cst_13 [1] : vector<2x8x128xf32> to vector<2x128xf32>
    %33 = arith.addf %30, %32 : vector<2x128xf32>
    %c0_14 = arith.constant 0 : index
    %c0_15 = arith.constant 0 : index
    %34 = vector.load %arg4[%c0_14, %c0_15] : memref<2x128xf32, #tpu.memory_space<vmem>>, vector<2x128xf32>
    tpu.vector_store %arg4[%c0_14, %c0_15], %33 {strides = array<i32>} : memref<2x128xf32, #tpu.memory_space<vmem>>, vector<2x128xf32>,
    %c0_16 = arith.constant 0 : index
    %c0_17 = arith.constant 0 : index
    %35 = vector.load %arg5[%c0_16, %c0_17] : memref<2x128xf32, #tpu.memory_space<vmem>>, vector<2x128xf32>
    %36 = arith.mulf %29, %4 : vector<2x1024xf32>
    %37 = vector.shape_cast %36 : vector<2x1024xf32> to vector<2x8x128xf32>
    %cst_18 = arith.constant dense<0.000000e+00> : vector<2x128xf32>
    %38 = vector.multi_reduction <add>, %37, %cst_18 [1] : vector<2x8x128xf32> to vector<2x128xf32>
    %39 = arith.addf %35, %38 : vector<2x128xf32>
    %c0_19 = arith.constant 0 : index
    %c0_20 = arith.constant 0 : index
    %40 = vector.load %arg5[%c0_19, %c0_20] : memref<2x128xf32, #tpu.memory_space<vmem>>, vector<2x128xf32>
    tpu.vector_store %arg5[%c0_19, %c0_20], %39 {strides = array<i32>} : memref<2x128xf32, #tpu.memory_space<vmem>>, vector<2x128xf32>,
    %c0_21 = arith.constant 0 : index
    %c0_22 = arith.constant 0 : index
    %41 = vector.load %arg6[%c0_21, %c0_22] : memref<2x128xf32, #tpu.memory_space<vmem>>, vector<2x128xf32>
    %42 = vector.shape_cast %29 : vector<2x1024xf32> to vector<2x8x128xf32>
    %cst_23 = arith.constant dense<0.000000e+00> : vector<2x128xf32>
    %43 = vector.multi_reduction <add>, %42, %cst_23 [1] : vector<2x8x128xf32> to vector<2x128xf32>
    %44 = arith.addf %41, %43 : vector<2x128xf32>
    %c0_24 = arith.constant 0 : index
    %c0_25 = arith.constant 0 : index
    %45 = vector.load %arg6[%c0_24, %c0_25] : memref<2x128xf32, #tpu.memory_space<vmem>>, vector<2x128xf32>
    tpu.vector_store %arg6[%c0_24, %c0_25], %44 {strides = array<i32>} : memref<2x128xf32, #tpu.memory_space<vmem>>, vector<2x128xf32>,
    %c0_26 = arith.constant 0 : index
    %c0_27 = arith.constant 0 : index
    %46 = vector.load %arg7[%c0_26, %c0_27] : memref<2x128xf32, #tpu.memory_space<vmem>>, vector<2x128xf32>
    %47 = vector.shape_cast %4 : vector<2x1024xf32> to vector<2x8x128xf32>
    %cst_28 = arith.constant dense<0.000000e+00> : vector<2x128xf32>
    %48 = vector.multi_reduction <add>, %47, %cst_28 [1] : vector<2x8x128xf32> to vector<2x128xf32>
    %49 = arith.addf %46, %48 : vector<2x128xf32>
    %c0_29 = arith.constant 0 : index
    %c0_30 = arith.constant 0 : index
    %50 = vector.load %arg7[%c0_29, %c0_30] : memref<2x128xf32, #tpu.memory_space<vmem>>, vector<2x128xf32>
    tpu.vector_store %arg7[%c0_29, %c0_30], %49 {strides = array<i32>} : memref<2x128xf32, #tpu.memory_space<vmem>>, vector<2x128xf32>,
    %c0_i32_31 = arith.constant 0 : i32
    %51 = arith.cmpi eq, %arg0, %c0_i32_31 : i32
    %52 = arith.extui %51 : i1 to i32
    %c0_i32_32 = arith.constant 0 : i32
    %53 = arith.cmpi ne, %52, %c0_i32_32 : i32
    scf.if %53 {
      %c0_33 = arith.constant 0 : index
      %c0_34 = arith.constant 0 : index
      %54 = vector.load %arg4[%c0_33, %c0_34] : memref<2x128xf32, #tpu.memory_space<vmem>>, vector<2x128xf32>
      %cst_35 = arith.constant dense<0.000000e+00> : vector<2xf32>
      %55 = vector.multi_reduction <add>, %54, %cst_35 [1] : vector<2x128xf32> to vector<2xf32>
      %56 = vector.shape_cast %55 : vector<2xf32> to vector<2x1xf32>
      %c0_36 = arith.constant 0 : index
      %c0_37 = arith.constant 0 : index
      %57 = vector.load %arg5[%c0_36, %c0_37] : memref<2x128xf32, #tpu.memory_space<vmem>>, vector<2x128xf32>
      %cst_38 = arith.constant dense<0.000000e+00> : vector<2xf32>
      %58 = vector.multi_reduction <add>, %57, %cst_38 [1] : vector<2x128xf32> to vector<2xf32>
      %59 = vector.shape_cast %58 : vector<2xf32> to vector<2x1xf32>
      %c0_39 = arith.constant 0 : index
      %c0_40 = arith.constant 0 : index
      %60 = vector.load %arg6[%c0_39, %c0_40] : memref<2x128xf32, #tpu.memory_space<vmem>>, vector<2x128xf32>
      %cst_41 = arith.constant dense<0.000000e+00> : vector<2xf32>
      %61 = vector.multi_reduction <add>, %60, %cst_41 [1] : vector<2x128xf32> to vector<2xf32>
      %62 = vector.shape_cast %61 : vector<2xf32> to vector<2x1xf32>
      %c0_42 = arith.constant 0 : index
      %c0_43 = arith.constant 0 : index
      %63 = vector.load %arg7[%c0_42, %c0_43] : memref<2x128xf32, #tpu.memory_space<vmem>>, vector<2x128xf32>
      %cst_44 = arith.constant dense<0.000000e+00> : vector<2xf32>
      %64 = vector.multi_reduction <add>, %63, %cst_44 [1] : vector<2x128xf32> to vector<2xf32>
      %65 = vector.shape_cast %64 : vector<2xf32> to vector<2x1xf32>
      %cst_45 = arith.constant 2.000000e+00 : f32
      %66 = vector.broadcast %cst_45 : f32 to vector<2x1xf32>
      %67 = arith.mulf %66, %59 : vector<2x1xf32>
      %cst_46 = arith.constant 1.000000e+00 : f32
      %68 = vector.broadcast %cst_46 : f32 to vector<2x1xf32>
      %69 = arith.addf %67, %68 : vector<2x1xf32>
      %70 = arith.addf %62, %65 : vector<2x1xf32>
      %cst_47 = arith.constant 1.000000e+00 : f32
      %71 = vector.broadcast %cst_47 : f32 to vector<2x1xf32>
      %72 = arith.addf %70, %71 : vector<2x1xf32>
      %73 = arith.divf %69, %72 : vector<2x1xf32>
      %cst_48 = arith.constant 1.000000e+00 : f32
      %74 = vector.broadcast %cst_48 : f32 to vector<2x1xf32>
      %75 = arith.subf %74, %73 : vector<2x1xf32>
      %cst_49 = arith.constant dense<0.000000e+00> : vector<1xf32>
      %76 = vector.multi_reduction <add>, %56, %cst_49 [0] : vector<2x1xf32> to vector<1xf32>
      %77 = vector.shape_cast %76 : vector<1xf32> to vector<1x1xf32>
      %cst_50 = arith.constant 2.048000e+03 : f32
      %78 = vector.broadcast %cst_50 : f32 to vector<1x1xf32>
      %79 = arith.divf %77, %78 : vector<1x1xf32>
      %cst_51 = arith.constant dense<0.000000e+00> : vector<1xf32>
      %80 = vector.multi_reduction <add>, %75, %cst_51 [0] : vector<2x1xf32> to vector<1xf32>
      %81 = vector.shape_cast %80 : vector<1xf32> to vector<1x1xf32>
      %cst_52 = arith.constant 2.000000e+00 : f32
      %82 = vector.broadcast %cst_52 : f32 to vector<1x1xf32>
      %83 = arith.divf %81, %82 : vector<1x1xf32>
      %cst_53 = arith.constant 1.000000e+00 : f32
      %84 = vector.broadcast %cst_53 : f32 to vector<1x1xf32>
      %85 = arith.mulf %84, %83 : vector<1x1xf32>
      %86 = arith.addf %79, %85 : vector<1x1xf32>
      %c0_54 = arith.constant 0 : index
      %c0_55 = arith.constant 0 : index
      %87 = vector.load %arg3[%c0_54, %c0_55] : memref<1x1xf32, #tpu.memory_space<vmem>>, vector<1x1xf32>
      tpu.vector_store %arg3[%c0_54, %c0_55], %86 {strides = array<i32>} : memref<1x1xf32, #tpu.memory_space<vmem>>, vector<1x1xf32>,
    } else {
    }
    return
  }
  func.func @transform_0(%arg0: i32) -> (i32, i32) {
    %c0_i32 = arith.constant 0 : i32
    %c0_i32_0 = arith.constant 0 : i32
    return %c0_i32, %arg0 : i32, i32
  }
  func.func @transform_1(%arg0: i32) -> (i32, i32) {
    %c0_i32 = arith.constant 0 : i32
    %c0_i32_0 = arith.constant 0 : i32
    return %c0_i32, %arg0 : i32, i32
  }
  func.func @transform_2(%arg0: i32) -> (i32, i32) {
    %c0_i32 = arith.constant 0 : i32
    %c0_i32_0 = arith.constant 0 : i32
    %c0_i32_1 = arith.constant 0 : i32
    return %c0_i32, %c0_i32_0 : i32, i32
  }
}

</mosaic_0001>

<llo_original>
// kernel: tpu_custom_call.1
$region0: #{tpu_custom_call.1}
  #allocation0 [shape = 'u32[]', space=smem, size = 0x4, offset = 0x4, fixed_abs, tag = 'smem constant byte address 0x4 - core index']
  #allocation1 [shape = 'u32[144,128]{1,0:T(1,128)}', space=vmem, size = 0x12000, scoped, tag = 'internal scratch']
  #allocation2 [shape = 'f32[2,128]{1,0:T(2,128)}', space=vmem, size = 0x400, scoped, tag = 'scratch operand']
  #allocation3 [shape = 'f32[2,128]{1,0:T(2,128)}', space=vmem, size = 0x400, scoped, tag = 'scratch operand']
  #allocation4 [shape = 'f32[2,128]{1,0:T(2,128)}', space=vmem, size = 0x400, scoped, tag = 'scratch operand']
  #allocation5 [shape = 'f32[2,128]{1,0:T(2,128)}', space=vmem, size = 0x400, scoped, tag = 'scratch operand']
  %s0 = inlined_call_operand.hbm [shape: f32[2,1024], index: 0, kind: input, shape index: {}]
  %s1 = inlined_call_operand.hbm [shape: f32[2,1024], index: 1, kind: input, shape index: {}]
  %s2 = inlined_call_operand.hbm [shape: f32[1,1], index: 2, kind: output, shape index: {}]
  %s3 = sld [smem:[#allocation0]]
  $region34: #{tpu_custom_call.1} parent=0
    _
  %s5 = ssub.s32 1, %s3
  %s6 = scalar_select 0, %s5, %s3
  $region1: #{tpu_custom_call.1} parent=0
    #allocation6 [shape = 'u8[8192]{0}', space=vmem, size = 0x2000, scoped, tag = 'input window, operand 0, single buffered']
    #allocation7 [shape = 's32[1]{0}', space=sflag, size = 0x4, scoped, tag = 'scoped memory for tpu_custom_call.1']
    #allocation8 [shape = 's32[1]{0}', space=sflag, size = 0x4, scoped, tag = 'scoped memory for tpu_custom_call.1']
    #allocation9 [shape = 'u8[8192]{0}', space=vmem, size = 0x2000, scoped, tag = 'input window, operand 1, single buffered']
    #allocation10 [shape = 's32[1]{0}', space=sflag, size = 0x4, scoped, tag = 'scoped memory for tpu_custom_call.1']
    #allocation11 [shape = 'u8[512]{0}', space=vmem, size = 0x400, scoped, tag = 'output window, operand 0, single buffered']
    %7 = vsyncpa [#allocation7], 0
    %8 = vsyncpa [#allocation10], 0
    %9 = vsyncpa [#allocation8], 0
    // Predicated region
    $region2: #{tpu_custom_call.1} parent=1 // pred_check
      _
    $region3: #{tpu_custom_call.1} parent=1 // pred_check_branch
      %11 = sbr.rel (0) target = $region5
    $region4: #{tpu_custom_call.1} parent=1 // pred_region
      %s13 = ssub.s32 256, 256
      %14 = vsyncadd [#allocation7], %s13
      %s16 = sshll.u32 [#allocation6], 4
      %s17 = int_to_ptr.vmem [resolvable:$true] %s16
      %19 = dma.hbm_to_vmem [thread:$0]  %s0, 256, %s17, [#allocation7]
    $region5: #{tpu_custom_call.1} parent=1 // pred_fallthru
      _
    // Predicated region
    $region6: #{tpu_custom_call.1} parent=1 // pred_check
      _
    $region7: #{tpu_custom_call.1} parent=1 // pred_check_branch
      %21 = sbr.rel (0) target = $region9
    $region8: #{tpu_custom_call.1} parent=1 // pred_region
      %s23 = ssub.s32 256, 256
      %24 = vsyncadd [#allocation10], %s23
      %s26 = sshll.u32 [#allocation9], 4
      %s27 = int_to_ptr.vmem [resolvable:$true] %s26
      %29 = dma.hbm_to_vmem [thread:$0]  %s1, 256, %s27, [#allocation10]
    $region9: #{tpu_custom_call.1} parent=1 // pred_fallthru
      _
    // Predicated region
    $region10: #{tpu_custom_call.1} parent=1 // pred_check
      _
    $region11: #{tpu_custom_call.1} parent=1 // pred_check_branch
      %31 = sbr.rel (0) target = $region13
    $region12: #{tpu_custom_call.1} parent=1 // pred_region
      %32 = dma.done [#allocation7], 256
    $region13: #{tpu_custom_call.1} parent=1 // pred_fallthru
      _
    // Predicated region
    $region14: #{tpu_custom_call.1} parent=1 // pred_check
      _
    $region15: #{tpu_custom_call.1} parent=1 // pred_check_branch
      %34 = sbr.rel (0) target = $region17
    $region16: #{tpu_custom_call.1} parent=1 // pred_region
      %35 = dma.done [#allocation10], 256
    $region17: #{tpu_custom_call.1} parent=1 // pred_fallthru
      _
    %p36 = scmp.eq.s32.totalorder 0, 0
    // Predicated region
    $region18: #{tpu_custom_call.1} parent=1 // pred_check
      %p37 = pneg %p36
    $region19: #{tpu_custom_call.1} parent=1 // pred_check_branch
      %39 = sbr.rel (%p37) target = $region21
    $region20: #{tpu_custom_call.1} parent=1 // pred_region
      %40 = vst [vmem:[#allocation2] sm:$0x3] 0.0
      %41 = vst [vmem:[#allocation3] sm:$0x3] 0.0
      %42 = vst [vmem:[#allocation4] sm:$0x3] 0.0
      %43 = vst [vmem:[#allocation5] sm:$0x3] 0.0
    $region21: #{tpu_custom_call.1} parent=1 // pred_fallthru
      _
    %v44 = vld [vmem:[#allocation6] sm:$0xff]
    %v45 = vld [vmem:[#allocation6 + $0x8] sm:$0xff]
    %v46 = vld [vmem:[#allocation9] sm:$0xff]
    %v47 = vld [vmem:[#allocation9 + $0x8] sm:$0xff]
    %v48 = vand.u32 2147483647, %v44
    %v49 = vand.u32 2147483647, %v45
    %v50 = vsub.f32 0.0, %v48
    %v51 = vsub.f32 0.0, %v49
    %v52 = vmul.f32 %v50, 1.442695
    %v53 = vpow.pop %v52
    %v54 = vmul.f32 %v51, 1.442695
    %v55 = vpow.pop %v54
    %v56 = vmax.f32 %v44, 0.0
    %v57 = vmax.f32 %v45, 0.0
    %v58 = vmul.f32 %v44, %v46
    %v59 = vmul.f32 %v45, %v47
    %v60 = vsub.f32 %v56, %v58
    %v61 = vsub.f32 %v57, %v59
    %v62 = vadd.f32 %v53, 1.0
    %v63 = vlog2.pop %v62
    %v64 = vmul.f32 %v63, 0.6931472
    %v65 = vmul.f32 -0.5, %v53
    %v66 = vadd.f32 %v65, 1.0
    %v67 = vmul.f32 %v66, %v53
    %v68 = vand.u32 2147483647, %v53
    %vm69 = vcmp.lt.f32.partialorder %v68, 0.0004427343
    %v70 = vsel %vm69, %v67, %v64
    %v71 = vadd.f32 %v55, 1.0
    %v72 = vlog2.pop %v71
    %v73 = vmul.f32 %v72, 0.6931472
    %v74 = vmul.f32 -0.5, %v55
    %v75 = vadd.f32 %v74, 1.0
    %v76 = vmul.f32 %v75, %v55
    %v77 = vand.u32 2147483647, %v55
    %vm78 = vcmp.lt.f32.partialorder %v77, 0.0004427343
    %v79 = vsel %vm78, %v76, %v73
    %v80 = vadd.f32 %v60, %v70
    %v81 = vadd.f32 %v61, %v79
    %v82 = vadd.f32 %v53, 1.0
    %v83 = vadd.f32 %v55, 1.0
    %v84 = vrcp.pop %v82
    %v85 = vmul.f32 1.0, %v84
    %v86 = vrcp.pop %v83
    %v87 = vmul.f32 1.0, %v86
    %vm88 = vcmp.ge.f32.partialorder %v44, 0.0
    %vm89 = vcmp.ge.f32.partialorder %v45, 0.0
    %v90 = vmul.f32 %v53, %v85
    %v91 = vmul.f32 %v55, %v87
    %v92 = vsel %vm88, %v85, %v90
    %v93 = vsel %vm89, %v87, %v91
    %v94 = vsub.f32 0.0, %v92
    %v95 = vsub.f32 0.0, %v93
    %v96 = vmul.f32 %v94, 1.442695
    %v97 = vpow.pop %v96
    %v98 = vmul.f32 %v95, 1.442695
    %v99 = vpow.pop %v98
    %v100 = vadd.f32 %v97, 1.0
    %v101 = vadd.f32 %v99, 1.0
    %v102 = vrcp.pop %v100
    %v103 = vmul.f32 1.0, %v102
    %v104 = vrcp.pop %v101
    %v105 = vmul.f32 1.0, %v104
    %v106 = vld [vmem:[#allocation2] sm:$0x3]
    %v108 = vrot.slane %v80, 2
    %v110 = vrot.slane %v80, 4
    %v112 = vrot.slane %v80, 6
    %v115 = vrot.slane %v81, 2
    %v117 = vrot.slane %v81, 4
    %v119 = vrot.slane %v81, 6
    %v121 = vcombine.low %v80, %v108
    %v123 = vunpack.c.l.s4 1934713408
    %v124 = vunpack.c.0.s8 %v123
    %v125 = vlaneseq
    %v126 = vshrl.u32 %v125, 7
    %v127 = vsub.s32 %v124, %v126
    %v128 = vrot.slane %v121, %v127
    %v129 = vcombine.high %v128, 0.0
    %v130 = vcombine.low %v110, %v112
    %v132 = vunpack.c.l.s4 1934713408
    %v133 = vunpack.c.0.s8 %v132
    %v134 = vlaneseq
    %v135 = vshrl.u32 %v134, 7
    %v136 = vsub.s32 %v133, %v135
    %v137 = vrot.slane %v130, %v136
    %v138 = vcombine.high %v137, 0.0
    %v139 = vcombine.low %v81, %v115
    %v141 = vunpack.c.l.s4 1934713408
    %v142 = vunpack.c.0.s8 %v141
    %v143 = vlaneseq
    %v144 = vshrl.u32 %v143, 7
    %v145 = vsub.s32 %v142, %v144
    %v146 = vrot.slane %v139, %v145
    %v147 = vcombine.high %v146, 0.0
    %v148 = vcombine.low %v117, %v119
    %v150 = vunpack.c.l.s4 1934713408
    %v151 = vunpack.c.0.s8 %v150
    %v152 = vlaneseq
    %v153 = vshrl.u32 %v152, 7
    %v154 = vsub.s32 %v151, %v153
    %v155 = vrot.slane %v148, %v154
    %v156 = vcombine.high %v155, 0.0
    %v165 = vcombine.low %v128, %v137
    %v166 = vcombine.low %v146, %v155
    %v168 = vunpack.c.l.s4 1983009808
    %v169 = vunpack.c.0.s8 %v168
    %v170 = vlaneseq
    %v171 = vshrl.u32 %v170, 7
    %v172 = vsub.s32 %v169, %v171
    %v173 = vrot.slane %v165, %v172
    %v175 = vunpack.c.l.s4 1983009808
    %v176 = vunpack.c.0.s8 %v175
    %v177 = vlaneseq
    %v178 = vshrl.u32 %v177, 7
    %v179 = vsub.s32 %v176, %v178
    %v180 = vrot.slane %v166, %v179
    %v181 = vcombine.low %v173, %v180
    %v182 = vcombine.low %v129, %v138
    %v183 = vcombine.low %v147, %v156
    %v185 = vunpack.c.l.s4 1983009808
    %v186 = vunpack.c.0.s8 %v185
    %v187 = vlaneseq
    %v188 = vshrl.u32 %v187, 7
    %v189 = vsub.s32 %v186, %v188
    %v190 = vrot.slane %v182, %v189
    %v192 = vunpack.c.l.s4 1983009808
    %v193 = vunpack.c.0.s8 %v192
    %v194 = vlaneseq
    %v195 = vshrl.u32 %v194, 7
    %v196 = vsub.s32 %v193, %v195
    %v197 = vrot.slane %v183, %v196
    %v198 = vcombine.low %v190, %v197
    %v201 = vrot.slane %v181, 4
    %v202 = vadd.f32 %v181, %v201
    %v203 = vrot.slane %v202, 2
    %v204 = vadd.f32 %v202, %v203
    %v205 = vrot.slane %v204, 1
    %v206 = vadd.f32 %v204, %v205
    %v207 = vrot.slane %v198, 4
    %v208 = vadd.f32 %v198, %v207
    %v209 = vrot.slane %v208, 2
    %v210 = vadd.f32 %v208, %v209
    %v211 = vrot.slane %v210, 1
    %v212 = vadd.f32 %v210, %v211
    %vm215 = vcmask 1041409
    %v216 = vsel %vm215, %v212, %v206
    %v218 = vadd.f32 %v106, %v216
    %219 = vst [vmem:[#allocation2] sm:$0x3] %v218
    %v220 = vld [vmem:[#allocation3] sm:$0x3]
    %v221 = vmul.f32 %v103, %v46
    %v222 = vmul.f32 %v105, %v47
    %v224 = vrot.slane %v221, 2
    %v226 = vrot.slane %v221, 4
    %v228 = vrot.slane %v221, 6
    %v231 = vrot.slane %v222, 2
    %v233 = vrot.slane %v222, 4
    %v235 = vrot.slane %v222, 6
    %v237 = vcombine.low %v221, %v224
    %v239 = vunpack.c.l.s4 1934713408
    %v240 = vunpack.c.0.s8 %v239
    %v241 = vlaneseq
    %v242 = vshrl.u32 %v241, 7
    %v243 = vsub.s32 %v240, %v242
    %v244 = vrot.slane %v237, %v243
    %v245 = vcombine.high %v244, 0.0
    %v246 = vcombine.low %v226, %v228
    %v248 = vunpack.c.l.s4 1934713408
    %v249 = vunpack.c.0.s8 %v248
    %v250 = vlaneseq
    %v251 = vshrl.u32 %v250, 7
    %v252 = vsub.s32 %v249, %v251
    %v253 = vrot.slane %v246, %v252
    %v254 = vcombine.high %v253, 0.0
    %v255 = vcombine.low %v222, %v231
    %v257 = vunpack.c.l.s4 1934713408
    %v258 = vunpack.c.0.s8 %v257
    %v259 = vlaneseq
    %v260 = vshrl.u32 %v259, 7
    %v261 = vsub.s32 %v258, %v260
    %v262 = vrot.slane %v255, %v261
    %v263 = vcombine.high %v262, 0.0
    %v264 = vcombine.low %v233, %v235
    %v266 = vunpack.c.l.s4 1934713408
    %v267 = vunpack.c.0.s8 %v266
    %v268 = vlaneseq
    %v269 = vshrl.u32 %v268, 7
    %v270 = vsub.s32 %v267, %v269
    %v271 = vrot.slane %v264, %v270
    %v272 = vcombine.high %v271, 0.0
    %v281 = vcombine.low %v244, %v253
    %v282 = vcombine.low %v262, %v271
    %v284 = vunpack.c.l.s4 1983009808
    %v285 = vunpack.c.0.s8 %v284
    %v286 = vlaneseq
    %v287 = vshrl.u32 %v286, 7
    %v288 = vsub.s32 %v285, %v287
    %v289 = vrot.slane %v281, %v288
    %v291 = vunpack.c.l.s4 1983009808
    %v292 = vunpack.c.0.s8 %v291
    %v293 = vlaneseq
    %v294 = vshrl.u32 %v293, 7
    %v295 = vsub.s32 %v292, %v294
    %v296 = vrot.slane %v282, %v295
    %v297 = vcombine.low %v289, %v296
    %v298 = vcombine.low %v245, %v254
    %v299 = vcombine.low %v263, %v272
    %v301 = vunpack.c.l.s4 1983009808
    %v302 = vunpack.c.0.s8 %v301
    %v303 = vlaneseq
    %v304 = vshrl.u32 %v303, 7
    %v305 = vsub.s32 %v302, %v304
    %v306 = vrot.slane %v298, %v305
    %v308 = vunpack.c.l.s4 1983009808
    %v309 = vunpack.c.0.s8 %v308
    %v310 = vlaneseq
    %v311 = vshrl.u32 %v310, 7
    %v312 = vsub.s32 %v309, %v311
    %v313 = vrot.slane %v299, %v312
    %v314 = vcombine.low %v306, %v313
    %v317 = vrot.slane %v297, 4
    %v318 = vadd.f32 %v297, %v317
    %v319 = vrot.slane %v318, 2
    %v320 = vadd.f32 %v318, %v319
    %v321 = vrot.slane %v320, 1
    %v322 = vadd.f32 %v320, %v321
    %v323 = vrot.slane %v314, 4
    %v324 = vadd.f32 %v314, %v323
    %v325 = vrot.slane %v324, 2
    %v326 = vadd.f32 %v324, %v325
    %v327 = vrot.slane %v326, 1
    %v328 = vadd.f32 %v326, %v327
    %v331 = vsel %vm215, %v328, %v322
    %v333 = vadd.f32 %v220, %v331
    %334 = vst [vmem:[#allocation3] sm:$0x3] %v333
    %v335 = vld [vmem:[#allocation4] sm:$0x3]
    %v337 = vrot.slane %v103, 2
    %v339 = vrot.slane %v103, 4
    %v341 = vrot.slane %v103, 6
    %v344 = vrot.slane %v105, 2
    %v346 = vrot.slane %v105, 4
    %v348 = vrot.slane %v105, 6
    %v350 = vcombine.low %v103, %v337
    %v352 = vunpack.c.l.s4 1934713408
    %v353 = vunpack.c.0.s8 %v352
    %v354 = vlaneseq
    %v355 = vshrl.u32 %v354, 7
    %v356 = vsub.s32 %v353, %v355
    %v357 = vrot.slane %v350, %v356
    %v358 = vcombine.high %v357, 0.0
    %v359 = vcombine.low %v339, %v341
    %v361 = vunpack.c.l.s4 1934713408
    %v362 = vunpack.c.0.s8 %v361
    %v363 = vlaneseq
    %v364 = vshrl.u32 %v363, 7
    %v365 = vsub.s32 %v362, %v364
    %v366 = vrot.slane %v359, %v365
    %v367 = vcombine.high %v366, 0.0
    %v368 = vcombine.low %v105, %v344
    %v370 = vunpack.c.l.s4 1934713408
    %v371 = vunpack.c.0.s8 %v370
    %v372 = vlaneseq
    %v373 = vshrl.u32 %v372, 7
    %v374 = vsub.s32 %v371, %v373
    %v375 = vrot.slane %v368, %v374
    %v376 = vcombine.high %v375, 0.0
    %v377 = vcombine.low %v346, %v348
    %v379 = vunpack.c.l.s4 1934713408
    %v380 = vunpack.c.0.s8 %v379
    %v381 = vlaneseq
    %v382 = vshrl.u32 %v381, 7
    %v383 = vsub.s32 %v380, %v382
    %v384 = vrot.slane %v377, %v383
    %v385 = vcombine.high %v384, 0.0
    %v394 = vcombine.low %v357, %v366
    %v395 = vcombine.low %v375, %v384
    %v397 = vunpack.c.l.s4 1983009808
    %v398 = vunpack.c.0.s8 %v397
    %v399 = vlaneseq
    %v400 = vshrl.u32 %v399, 7
    %v401 = vsub.s32 %v398, %v400
    %v402 = vrot.slane %v394, %v401
    %v404 = vunpack.c.l.s4 1983009808
    %v405 = vunpack.c.0.s8 %v404
    %v406 = vlaneseq
    %v407 = vshrl.u32 %v406, 7
    %v408 = vsub.s32 %v405, %v407
    %v409 = vrot.slane %v395, %v408
    %v410 = vcombine.low %v402, %v409
    %v411 = vcombine.low %v358, %v367
    %v412 = vcombine.low %v376, %v385
    %v414 = vunpack.c.l.s4 1983009808
    %v415 = vunpack.c.0.s8 %v414
    %v416 = vlaneseq
    %v417 = vshrl.u32 %v416, 7
    %v418 = vsub.s32 %v415, %v417
    %v419 = vrot.slane %v411, %v418
    %v421 = vunpack.c.l.s4 1983009808
    %v422 = vunpack.c.0.s8 %v421
    %v423 = vlaneseq
    %v424 = vshrl.u32 %v423, 7
    %v425 = vsub.s32 %v422, %v424
    %v426 = vrot.slane %v412, %v425
    %v427 = vcombine.low %v419, %v426
    %v430 = vrot.slane %v410, 4
    %v431 = vadd.f32 %v410, %v430
    %v432 = vrot.slane %v431, 2
    %v433 = vadd.f32 %v431, %v432
    %v434 = vrot.slane %v433, 1
    %v435 = vadd.f32 %v433, %v434
    %v436 = vrot.slane %v427, 4
    %v437 = vadd.f32 %v427, %v436
    %v438 = vrot.slane %v437, 2
    %v439 = vadd.f32 %v437, %v438
    %v440 = vrot.slane %v439, 1
    %v441 = vadd.f32 %v439, %v440
    %v444 = vsel %vm215, %v441, %v435
    %v446 = vadd.f32 %v335, %v444
    %447 = vst [vmem:[#allocation4] sm:$0x3] %v446
    %v448 = vld [vmem:[#allocation5] sm:$0x3]
    %v450 = vrot.slane %v46, 2
    %v452 = vrot.slane %v46, 4
    %v454 = vrot.slane %v46, 6
    %v457 = vrot.slane %v47, 2
    %v459 = vrot.slane %v47, 4
    %v461 = vrot.slane %v47, 6
    %v463 = vcombine.low %v46, %v450
    %v465 = vunpack.c.l.s4 1934713408
    %v466 = vunpack.c.0.s8 %v465
    %v467 = vlaneseq
    %v468 = vshrl.u32 %v467, 7
    %v469 = vsub.s32 %v466, %v468
    %v470 = vrot.slane %v463, %v469
    %v471 = vcombine.high %v470, 0.0
    %v472 = vcombine.low %v452, %v454
    %v474 = vunpack.c.l.s4 1934713408
    %v475 = vunpack.c.0.s8 %v474
    %v476 = vlaneseq
    %v477 = vshrl.u32 %v476, 7
    %v478 = vsub.s32 %v475, %v477
    %v479 = vrot.slane %v472, %v478
    %v480 = vcombine.high %v479, 0.0
    %v481 = vcombine.low %v47, %v457
    %v483 = vunpack.c.l.s4 1934713408
    %v484 = vunpack.c.0.s8 %v483
    %v485 = vlaneseq
    %v486 = vshrl.u32 %v485, 7
    %v487 = vsub.s32 %v484, %v486
    %v488 = vrot.slane %v481, %v487
    %v489 = vcombine.high %v488, 0.0
    %v490 = vcombine.low %v459, %v461
    %v492 = vunpack.c.l.s4 1934713408
    %v493 = vunpack.c.0.s8 %v492
    %v494 = vlaneseq
    %v495 = vshrl.u32 %v494, 7
    %v496 = vsub.s32 %v493, %v495
    %v497 = vrot.slane %v490, %v496
    %v498 = vcombine.high %v497, 0.0
    %v507 = vcombine.low %v470, %v479
    %v508 = vcombine.low %v488, %v497
    %v510 = vunpack.c.l.s4 1983009808
    %v511 = vunpack.c.0.s8 %v510
    %v512 = vlaneseq
    %v513 = vshrl.u32 %v512, 7
    %v514 = vsub.s32 %v511, %v513
    %v515 = vrot.slane %v507, %v514
    %v517 = vunpack.c.l.s4 1983009808
    %v518 = vunpack.c.0.s8 %v517
    %v519 = vlaneseq
    %v520 = vshrl.u32 %v519, 7
    %v521 = vsub.s32 %v518, %v520
    %v522 = vrot.slane %v508, %v521
    %v523 = vcombine.low %v515, %v522
    %v524 = vcombine.low %v471, %v480
    %v525 = vcombine.low %v489, %v498
    %v527 = vunpack.c.l.s4 1983009808
    %v528 = vunpack.c.0.s8 %v527
    %v529 = vlaneseq
    %v530 = vshrl.u32 %v529, 7
    %v531 = vsub.s32 %v528, %v530
    %v532 = vrot.slane %v524, %v531
    %v534 = vunpack.c.l.s4 1983009808
    %v535 = vunpack.c.0.s8 %v534
    %v536 = vlaneseq
    %v537 = vshrl.u32 %v536, 7
    %v538 = vsub.s32 %v535, %v537
    %v539 = vrot.slane %v525, %v538
    %v540 = vcombine.low %v532, %v539
    %v543 = vrot.slane %v523, 4
    %v544 = vadd.f32 %v523, %v543
    %v545 = vrot.slane %v544, 2
    %v546 = vadd.f32 %v544, %v545
    %v547 = vrot.slane %v546, 1
    %v548 = vadd.f32 %v546, %v547
    %v549 = vrot.slane %v540, 4
    %v550 = vadd.f32 %v540, %v549
    %v551 = vrot.slane %v550, 2
    %v552 = vadd.f32 %v550, %v551
    %v553 = vrot.slane %v552, 1
    %v554 = vadd.f32 %v552, %v553
    %v557 = vsel %vm215, %v554, %v548
    %v559 = vadd.f32 %v448, %v557
    %560 = vst [vmem:[#allocation5] sm:$0x3] %v559
    // Predicated region
    $region22: #{tpu_custom_call.1} parent=1 // pred_check
      %p561 = pneg %p36
    $region23: #{tpu_custom_call.1} parent=1 // pred_check_branch
      %563 = sbr.rel (%p561) target = $region25
    $region24: #{tpu_custom_call.1} parent=1 // pred_region
      %v564 = vld [vmem:[#allocation2] sm:$0x3]
      %vm565 = vcmask 1041408
      %v566 = vsel %vm565, %v564, 0.0
      %567 = vadd.xlane.f32.xlu0 %v566
      %v568 = vpop.xlane.xlu0 %567
      %v569 = vld [vmem:[#allocation3] sm:$0x3]
      %v570 = vsel %vm565, %v569, 0.0
      %571 = vadd.xlane.f32.xlu0 %v570
      %v572 = vpop.xlane.xlu0 %571
      %v573 = vld [vmem:[#allocation4] sm:$0x3]
      %v574 = vsel %vm565, %v573, 0.0
      %575 = vadd.xlane.f32.xlu0 %v574
      %v576 = vpop.xlane.xlu0 %575
      %v577 = vld [vmem:[#allocation5] sm:$0x3]
      %v578 = vsel %vm565, %v577, 0.0
      %579 = vadd.xlane.f32.xlu0 %v578
      %v580 = vpop.xlane.xlu0 %579
      %v581 = vmul.f32 %v572, 2.0
      %v582 = vadd.f32 %v581, 1.0
      %v583 = vadd.f32 %v576, %v580
      %v584 = vadd.f32 %v583, 1.0
      %v585 = vrcp.pop %v584
      %v586 = vmul.f32 %v582, %v585
      %v587 = vsub.f32 1.0, %v586
      %v588 = vsel %vm565, %v568, 0.0
      %v589 = vrot.slane %v588, 4
      %v590 = vadd.f32 %v588, %v589
      %v591 = vrot.slane %v590, 2
      %v592 = vadd.f32 %v590, %v591
      %v593 = vrot.slane %v592, 1
      %v594 = vadd.f32 %v592, %v593
      %v595 = vrcp.pop 2048.0
      %v596 = vmul.f32 %v594, %v595
      %v597 = vsel %vm565, %v587, 0.0
      %v598 = vrot.slane %v597, 4
      %v599 = vadd.f32 %v597, %v598
      %v600 = vrot.slane %v599, 2
      %v601 = vadd.f32 %v599, %v600
      %v602 = vrot.slane %v601, 1
      %v603 = vadd.f32 %v601, %v602
      %v604 = vrcp.pop 2.0
      %v605 = vmul.f32 %v603, %v604
      %v606 = vadd.f32 %v596, %v605
      %vm607 = vcmask 0
      %608 = vst.msk [vmem:[#allocation11] sm:$0x1] %vm607, %v606
    $region25: #{tpu_custom_call.1} parent=1 // pred_fallthru
      _
    // Predicated region
    $region26: #{tpu_custom_call.1} parent=1 // pred_check
      _
    $region27: #{tpu_custom_call.1} parent=1 // pred_check_branch
      %610 = sbr.rel (0) target = $region29
    $region28: #{tpu_custom_call.1} parent=1 // pred_region
      %s612 = ssub.s32 16, 16
      %613 = vsyncadd [#allocation8], %s612
      %s615 = sshll.u32 [#allocation11], 4
      %s616 = int_to_ptr.vmem [resolvable:$true] %s615
      %618 = dma.vmem_to_hbm [thread:$0]  %s616, 16, %s2, [#allocation8]
    $region29: #{tpu_custom_call.1} parent=1 // pred_fallthru
      _
    // Predicated region
    $region30: #{tpu_custom_call.1} parent=1 // pred_check
      _
    $region31: #{tpu_custom_call.1} parent=1 // pred_check_branch
      %620 = sbr.rel (0) target = $region33
    $region32: #{tpu_custom_call.1} parent=1 // pred_region
      %621 = dma.done [#allocation8], 16
    $region33: #{tpu_custom_call.1} parent=1 // pred_fallthru
      _
    %622 = vsyncpa [#allocation7], 1
    %623 = vsyncpa [#allocation10], 1
    %624 = vsyncpa [#allocation8], 1

</llo_original>
